<compile_context>
chip_gen: v7x
topology: tpu7x:2x2x1
jax: 0.10.0
libtpu: 0.0.40
codegen_flags: <defaults>
</compile_context>

<pallas_src>
import numpy as np
import jax
import jax.numpy as jnp
from jax.experimental import pallas as pl
from jax.experimental.pallas import tpu as pltpu


_GRANULE = 1024  # 8 sublanes x 128 lanes -> one full f32 vreg tile per row


# ---------------------------------------------------------------------------
# Constant setup (glue): Haar (db1, mode='zero') impulse-response basis.
# ---------------------------------------------------------------------------
def haar_impulse_basis(max_level: int, wavelet_type: str = "db1") -> np.ndarray:
    """Row j-1 = DWT(J=j, mode='zero') coefficients of the unit impulse e_0 of
    length 2**j, concatenated [cA_j, cD_1, ..., cD_j], zero-padded to
    2**max_level.  The affine collapse is ONLY valid for db1/Haar + 'zero'."""
    assert wavelet_type in ("db1", "haar"), (
        "affine collapse requires wavelet_type='db1' (Haar) with mode='zero'")
    wlen = 2 ** max_level
    basis = np.zeros((max_level, wlen), dtype=np.float32)
    for j in range(1, max_level + 1):
        basis[j - 1, 0] = 2.0 ** (-j / 2.0)          # cA_j[0]
        off = 1
        for m in range(1, j + 1):
            basis[j - 1, off] = 2.0 ** (-m / 2.0)    # cD_m[0]
            off += 2 ** (j - m)
    return basis


# ---------------------------------------------------------------------------
# Pallas kernel: one full-sublane tile of the fused affine map.
#   out[o, s, l] = sum_f W[o, f] * x[f, s, l] + b[o]
# ---------------------------------------------------------------------------
def _wavelet_kan_kernel(x_ref, w_ref, b_ref, o_ref):
    # x_ref: (feat, s_tile, 128)    VMEM  (M on sublane x lane axes, s_tile >= 8)
    # w_ref: (out_dim, feat)        f32 SMEM (fused weight, grid-invariant)
    # b_ref: (out_dim,)             f32 SMEM (fused bias,   grid-invariant)
    # o_ref: (out_dim, s_tile, 128) VMEM
    feat = x_ref.shape[0]
    out_dim = o_ref.shape[0]

    x = x_ref[...].astype(jnp.float32)          # math in f32 (v5e VPU: no bf16)
    for o in range(out_dim):                    # tiny static dims -> unrolled
        acc = x[0] * w_ref[o, 0]                # SMEM scalar * full (8,128) tiles
        for f in range(1, feat):
            acc = acc + x[f] * w_ref[o, f]
        # Direct per-row store (no rows[] list, no sublane concat).
        o_ref[o] = (acc + b_ref[o]).astype(o_ref.dtype)


# ---------------------------------------------------------------------------
# Wrapper helpers.
# ---------------------------------------------------------------------------
def _round_up(a: int, b: int) -> int:
    return (a + b - 1) // b * b


def _choose_tile_granules(n_granules: int, desired_granules: int) -> int:
    """Granules (1024 cols) per grid step: <= desired, exact divisor of the
    padded extent, and keep >=2 grid steps when possible (v7x has 2 TCs)."""
    g = max(1, min(desired_granules, n_granules))
    if n_granules >= 2:
        g = min(g, (n_granules + 1) // 2)
    while n_granules % g:
        g -= 1
    return g


def fuse_params(params, level_onehot, cbasis):
    """Grid-invariant algebra hoisted out of the kernel.
    alpha[i] = <(weights_i @ cbasis), W_nl[i]>; valid for any per-feature level
    weights summing to 1 (gumbel_softmax hard or soft); db1/'zero' only."""
    alpha = jnp.sum((level_onehot @ cbasis) * params["W_nl"], axis=-1)       # (feat,)
    w_fused = (params["W_out"] * alpha[None, :]).astype(jnp.float32)         # (out, feat)
    b_fused = (params["W_out"] @ params["b_nl"]
               + params["b_out"]).astype(jnp.float32)                        # (out,)
    return w_fused, b_fused


def wavelet_kan_forward_t(x_t, w_fused, b_fused, *, tile_m=4096,
                          out_dtype=jnp.float32):
    """Core kernel on the lane-dense transposed layout:
         x_t (feat, M)  ->  (out_dim, M).
    Chain layers in this layout to avoid HBM round trips for transposes."""
    feat, M = x_t.shape
    out_dim = w_fused.shape[0]

    # Pad M only to the 1024 granule (not to tile_m): waste stays < 1 granule.
    M_pad = _round_up(max(M, 1), _GRANULE)
    if M_pad != M:
        x_t = jnp.pad(x_t, ((0, 0), (0, M_pad - M)))
    n_gran = M_pad // _GRANULE
    g = _choose_tile_granules(n_gran, max(1, tile_m // _GRANULE))
    s_tile = g * (_GRANULE // 128)              # sublane rows per step (mult of 8)
    S = M_pad // 128

    x3 = x_t.reshape(feat, S, 128)              # contiguous -> free reshape

    out3 = pl.pallas_call(
        _wavelet_kan_kernel,
        out_shape=jax.ShapeDtypeStruct((out_dim, S, 128), out_dtype),
        grid_spec=pltpu.PrefetchScalarGridSpec(
            num_scalar_prefetch=0,
            grid=(S // s_tile,),
            in_specs=[
                pl.BlockSpec((feat, s_tile, 128), lambda i: (0, i, 0)),  # x tile
                pl.BlockSpec(memory_space=pltpu.MemorySpace.SMEM),       # fused W
                pl.BlockSpec(memory_space=pltpu.MemorySpace.SMEM),       # fused b
            ],
            out_specs=pl.BlockSpec((out_dim, s_tile, 128), lambda i: (0, i, 0)),
        ),
        compiler_params=pltpu.CompilerParams(
            dimension_semantics=("parallel",)),   # shards M-loop across v7x's 2 TCs
    )(x3, w_fused, b_fused)

    return out3.reshape(out_dim, M_pad)[:, :M]


def wavelet_kan_forward(x, params, level_onehot, cbasis, *, tile_m=4096,
                        out_dtype=jnp.float32):
    """(batch, node, feat) -> (batch, node, out_dim).  The transposes here are
    XLA-side layout plumbing for the single-layer demo; in a multi-layer model
    stay in the (feat, M) layout and call wavelet_kan_forward_t directly."""
    batch, node, feat = x.shape
    M = batch * node
    w_fused, b_fused = fuse_params(params, level_onehot, cbasis)
    x_t = jnp.transpose(x, (2, 0, 1)).reshape(feat, M)   # stays f32 (bit parity)
    out_t = wavelet_kan_forward_t(x_t, w_fused, b_fused,
                                  tile_m=tile_m, out_dtype=out_dtype)
    return out_t.T.reshape(batch, node, -1)


# ---------------------------------------------------------------------------
# Deterministic parameter init (mirrors the module's __init__ shapes).
# ---------------------------------------------------------------------------
def init_params(key, feat_dim, out_dim, max_dwt_level):
    wlen = 2 ** max_dwt_level
    k = jax.random.split(key, 5)
    level_logits = jax.random.normal(k[0], (max_dwt_level,), jnp.float32)
    lim_nl = 1.0 / np.sqrt(wlen)
    W_nl = jax.random.uniform(k[1], (feat_dim, wlen), jnp.float32, -lim_nl, lim_nl)
    b_nl = jax.random.uniform(k[2], (feat_dim,), jnp.float32, -lim_nl, lim_nl)
    lim_o = 1.0 / np.sqrt(feat_dim)
    W_out = jax.random.uniform(k[3], (out_dim, feat_dim), jnp.float32, -lim_o, lim_o)
    b_out = jax.random.uniform(k[4], (out_dim,), jnp.float32, -lim_o, lim_o)
    return dict(level_logits=level_logits, W_nl=W_nl, b_nl=b_nl,
                W_out=W_out, b_out=b_out)


def gumbel_hard_onehot(key, logits, feat_dim):
    """F.gumbel_softmax(logits, tau=1.0, hard=True) forward value, drawn
    independently once per feature (matches the per-feature call in forward)."""
    g = jax.random.gumbel(key, (feat_dim, logits.shape[0]), jnp.float32)
    idx = jnp.argmax(logits[None, :] + g, axis=-1)
    return jax.nn.one_hot(idx, logits.shape[0], dtype=jnp.float32)


# ---------------------------------------------------------------------------
# Pure-JAX reference (explicit Haar DWT, no impulse-response shortcut).
# ---------------------------------------------------------------------------
def _reference_wavelet_feature(v, j, wlen):
    sqrt2 = np.sqrt(2.0).astype(np.float32)
    sig = jnp.zeros((v.shape[0], 2 ** j), jnp.float32).at[:, 0].set(v)
    cur, cDs = sig, []
    for _ in range(j):
        even, odd = cur[:, 0::2], cur[:, 1::2]
        cDs.append((even - odd) / sqrt2)
        cur = (even + odd) / sqrt2
    feat_cat = jnp.concatenate([cur] + cDs, axis=-1)
    pad = wlen - feat_cat.shape[-1]
    return jnp.pad(feat_cat, ((0, 0), (0, pad)))


def reference_forward(x, params, level_onehot, max_level):
    batch, node, feat = x.shape
    wlen = 2 ** max_level
    outs = []
    for i in range(feat):
        xi = x[:, :, i].reshape(-1)
        level_feats = []
        for j in range(1, max_level + 1):
            fc = _reference_wavelet_feature(xi, j, wlen)
            level_feats.append(fc @ params["W_nl"][i] + params["b_nl"][i])
        stacked = jnp.stack(level_feats, axis=-1)                   # (M, nlev)
        xi_soft = jnp.sum(stacked * level_onehot[i][None, :], axis=-1)
        outs.append(xi_soft.reshape(batch, node, 1))
    agg = jnp.concatenate(outs, axis=-1)
    return agg @ params["W_out"].T + params["b_out"]


# ---------------------------------------------------------------------------
if __name__ == "__main__":
    batch, node, feat_dim, out_dim, max_dwt_level = 4, 500, 4, 6, 3

    key = jax.random.PRNGKey(0)
    kx, kp, kg = jax.random.split(key, 3)

    x = jax.random.normal(kx, (batch, node, feat_dim), jnp.float32)
    params = init_params(kp, feat_dim, out_dim, max_dwt_level)
    level_onehot = gumbel_hard_onehot(kg, params["level_logits"], feat_dim)
    cbasis = jnp.asarray(haar_impulse_basis(max_dwt_level, wavelet_type="db1"))

    out = wavelet_kan_forward(x, params, level_onehot, cbasis, tile_m=4096)
    out = jax.block_until_ready(out)

    ref = reference_forward(x, params, level_onehot, max_dwt_level)
    np.testing.assert_allclose(np.asarray(out), np.asarray(ref),
                               rtol=1e-5, atol=1e-5)
    assert out.shape == (batch, node, out_dim)
    print("KERNEL_OK")
</pallas_src>

<mosaic_0001>
module attributes {stable_mosaic.version = 11 : i64} {
  func.func @_wavelet_kan_kernel(%arg0: i32, %arg1: memref<4x8x128xf32, #tpu.memory_space<vmem>>, %arg2: memref<6x4xf32, #tpu.memory_space<smem>>, %arg3: memref<6xf32, #tpu.memory_space<smem>>, %arg4: memref<6x8x128xf32, #tpu.memory_space<vmem>>) attributes {dimension_semantics = [#tpu.dimension_semantics<parallel>], iteration_bounds = array<i64: 2>, scalar_prefetch = 0 : i64, scratch_operands = 0 : i64, tpu.core_type = #tpu.core_type<tc>, window_params = [{transform_indices = @transform_0, window_bounds = array<i64: 4, 8, 128>}, {transform_indices = @transform_1, window_bounds = array<i64: 6, 4>}, {transform_indices = @transform_2, window_bounds = array<i64: 6>}, {transform_indices = @transform_3, window_bounds = array<i64: 6, 8, 128>}]} {
    %c0 = arith.constant 0 : index
    %c0_0 = arith.constant 0 : index
    %c0_1 = arith.constant 0 : index
    %0 = vector.load %arg1[%c0, %c0_0, %c0_1] : memref<4x8x128xf32, #tpu.memory_space<vmem>>, vector<4x8x128xf32>
    %1 = vector.extract_strided_slice %0 {offsets = [0, 0, 0], sizes = [1, 8, 128], strides = [1, 1, 1]} : vector<4x8x128xf32> to vector<1x8x128xf32>
    %2 = vector.shape_cast %1 : vector<1x8x128xf32> to vector<8x128xf32>
    %c0_2 = arith.constant 0 : index
    %c0_3 = arith.constant 0 : index
    %3 = memref.load %arg2[%c0_2, %c0_3] : memref<6x4xf32, #tpu.memory_space<smem>>
    %4 = vector.broadcast %3 : f32 to vector<8x128xf32>
    %5 = arith.mulf %2, %4 : vector<8x128xf32>
    %6 = vector.extract_strided_slice %0 {offsets = [1, 0, 0], sizes = [1, 8, 128], strides = [1, 1, 1]} : vector<4x8x128xf32> to vector<1x8x128xf32>
    %7 = vector.shape_cast %6 : vector<1x8x128xf32> to vector<8x128xf32>
    %c0_4 = arith.constant 0 : index
    %c1 = arith.constant 1 : index
    %8 = memref.load %arg2[%c0_4, %c1] : memref<6x4xf32, #tpu.memory_space<smem>>
    %9 = vector.broadcast %8 : f32 to vector<8x128xf32>
    %10 = arith.mulf %7, %9 : vector<8x128xf32>
    %11 = arith.addf %5, %10 : vector<8x128xf32>
    %12 = vector.extract_strided_slice %0 {offsets = [2, 0, 0], sizes = [1, 8, 128], strides = [1, 1, 1]} : vector<4x8x128xf32> to vector<1x8x128xf32>
    %13 = vector.shape_cast %12 : vector<1x8x128xf32> to vector<8x128xf32>
    %c0_5 = arith.constant 0 : index
    %c2 = arith.constant 2 : index
    %14 = memref.load %arg2[%c0_5, %c2] : memref<6x4xf32, #tpu.memory_space<smem>>
    %15 = vector.broadcast %14 : f32 to vector<8x128xf32>
    %16 = arith.mulf %13, %15 : vector<8x128xf32>
    %17 = arith.addf %11, %16 : vector<8x128xf32>
    %18 = vector.extract_strided_slice %0 {offsets = [3, 0, 0], sizes = [1, 8, 128], strides = [1, 1, 1]} : vector<4x8x128xf32> to vector<1x8x128xf32>
    %19 = vector.shape_cast %18 : vector<1x8x128xf32> to vector<8x128xf32>
    %c0_6 = arith.constant 0 : index
    %c3 = arith.constant 3 : index
    %20 = memref.load %arg2[%c0_6, %c3] : memref<6x4xf32, #tpu.memory_space<smem>>
    %21 = vector.broadcast %20 : f32 to vector<8x128xf32>
    %22 = arith.mulf %19, %21 : vector<8x128xf32>
    %23 = arith.addf %17, %22 : vector<8x128xf32>
    %c0_7 = arith.constant 0 : index
    %24 = memref.load %arg3[%c0_7] : memref<6xf32, #tpu.memory_space<smem>>
    %25 = vector.broadcast %24 : f32 to vector<8x128xf32>
    %26 = arith.addf %23, %25 : vector<8x128xf32>
    %c0_8 = arith.constant 0 : index
    %c0_9 = arith.constant 0 : index
    %c0_10 = arith.constant 0 : index
    %27 = vector.load %arg4[%c0_8, %c0_9, %c0_10] : memref<6x8x128xf32, #tpu.memory_space<vmem>>, vector<1x8x128xf32>
    %28 = vector.shape_cast %27 : vector<1x8x128xf32> to vector<8x128xf32>
    %29 = vector.shape_cast %26 : vector<8x128xf32> to vector<1x8x128xf32>
    tpu.vector_store %arg4[%c0_8, %c0_9, %c0_10], %29 {strides = array<i32>} : memref<6x8x128xf32, #tpu.memory_space<vmem>>, vector<1x8x128xf32>,
    %30 = vector.extract_strided_slice %0 {offsets = [0, 0, 0], sizes = [1, 8, 128], strides = [1, 1, 1]} : vector<4x8x128xf32> to vector<1x8x128xf32>
    %31 = vector.shape_cast %30 : vector<1x8x128xf32> to vector<8x128xf32>
    %c1_11 = arith.constant 1 : index
    %c0_12 = arith.constant 0 : index
    %32 = memref.load %arg2[%c1_11, %c0_12] : memref<6x4xf32, #tpu.memory_space<smem>>
    %33 = vector.broadcast %32 : f32 to vector<8x128xf32>
    %34 = arith.mulf %31, %33 : vector<8x128xf32>
    %35 = vector.extract_strided_slice %0 {offsets = [1, 0, 0], sizes = [1, 8, 128], strides = [1, 1, 1]} : vector<4x8x128xf32> to vector<1x8x128xf32>
    %36 = vector.shape_cast %35 : vector<1x8x128xf32> to vector<8x128xf32>
    %c1_13 = arith.constant 1 : index
    %c1_14 = arith.constant 1 : index
    %37 = memref.load %arg2[%c1_13, %c1_14] : memref<6x4xf32, #tpu.memory_space<smem>>
    %38 = vector.broadcast %37 : f32 to vector<8x128xf32>
    %39 = arith.mulf %36, %38 : vector<8x128xf32>
    %40 = arith.addf %34, %39 : vector<8x128xf32>
    %41 = vector.extract_strided_slice %0 {offsets = [2, 0, 0], sizes = [1, 8, 128], strides = [1, 1, 1]} : vector<4x8x128xf32> to vector<1x8x128xf32>
    %42 = vector.shape_cast %41 : vector<1x8x128xf32> to vector<8x128xf32>
    %c1_15 = arith.constant 1 : index
    %c2_16 = arith.constant 2 : index
    %43 = memref.load %arg2[%c1_15, %c2_16] : memref<6x4xf32, #tpu.memory_space<smem>>
    %44 = vector.broadcast %43 : f32 to vector<8x128xf32>
    %45 = arith.mulf %42, %44 : vector<8x128xf32>
    %46 = arith.addf %40, %45 : vector<8x128xf32>
    %47 = vector.extract_strided_slice %0 {offsets = [3, 0, 0], sizes = [1, 8, 128], strides = [1, 1, 1]} : vector<4x8x128xf32> to vector<1x8x128xf32>
    %48 = vector.shape_cast %47 : vector<1x8x128xf32> to vector<8x128xf32>
    %c1_17 = arith.constant 1 : index
    %c3_18 = arith.constant 3 : index
    %49 = memref.load %arg2[%c1_17, %c3_18] : memref<6x4xf32, #tpu.memory_space<smem>>
    %50 = vector.broadcast %49 : f32 to vector<8x128xf32>
    %51 = arith.mulf %48, %50 : vector<8x128xf32>
    %52 = arith.addf %46, %51 : vector<8x128xf32>
    %c1_19 = arith.constant 1 : index
    %53 = memref.load %arg3[%c1_19] : memref<6xf32, #tpu.memory_space<smem>>
    %54 = vector.broadcast %53 : f32 to vector<8x128xf32>
    %55 = arith.addf %52, %54 : vector<8x128xf32>
    %c1_20 = arith.constant 1 : index
    %c0_21 = arith.constant 0 : index
    %c0_22 = arith.constant 0 : index
    %56 = vector.load %arg4[%c1_20, %c0_21, %c0_22] : memref<6x8x128xf32, #tpu.memory_space<vmem>>, vector<1x8x128xf32>
    %57 = vector.shape_cast %56 : vector<1x8x128xf32> to vector<8x128xf32>
    %58 = vector.shape_cast %55 : vector<8x128xf32> to vector<1x8x128xf32>
    tpu.vector_store %arg4[%c1_20, %c0_21, %c0_22], %58 {strides = array<i32>} : memref<6x8x128xf32, #tpu.memory_space<vmem>>, vector<1x8x128xf32>,
    %59 = vector.extract_strided_slice %0 {offsets = [0, 0, 0], sizes = [1, 8, 128], strides = [1, 1, 1]} : vector<4x8x128xf32> to vector<1x8x128xf32>
    %60 = vector.shape_cast %59 : vector<1x8x128xf32> to vector<8x128xf32>
    %c2_23 = arith.constant 2 : index
    %c0_24 = arith.constant 0 : index
    %61 = memref.load %arg2[%c2_23, %c0_24] : memref<6x4xf32, #tpu.memory_space<smem>>
    %62 = vector.broadcast %61 : f32 to vector<8x128xf32>
    %63 = arith.mulf %60, %62 : vector<8x128xf32>
    %64 = vector.extract_strided_slice %0 {offsets = [1, 0, 0], sizes = [1, 8, 128], strides = [1, 1, 1]} : vector<4x8x128xf32> to vector<1x8x128xf32>
    %65 = vector.shape_cast %64 : vector<1x8x128xf32> to vector<8x128xf32>
    %c2_25 = arith.constant 2 : index
    %c1_26 = arith.constant 1 : index
    %66 = memref.load %arg2[%c2_25, %c1_26] : memref<6x4xf32, #tpu.memory_space<smem>>
    %67 = vector.broadcast %66 : f32 to vector<8x128xf32>
    %68 = arith.mulf %65, %67 : vector<8x128xf32>
    %69 = arith.addf %63, %68 : vector<8x128xf32>
    %70 = vector.extract_strided_slice %0 {offsets = [2, 0, 0], sizes = [1, 8, 128], strides = [1, 1, 1]} : vector<4x8x128xf32> to vector<1x8x128xf32>
    %71 = vector.shape_cast %70 : vector<1x8x128xf32> to vector<8x128xf32>
    %c2_27 = arith.constant 2 : index
    %c2_28 = arith.constant 2 : index
    %72 = memref.load %arg2[%c2_27, %c2_28] : memref<6x4xf32, #tpu.memory_space<smem>>
    %73 = vector.broadcast %72 : f32 to vector<8x128xf32>
    %74 = arith.mulf %71, %73 : vector<8x128xf32>
    %75 = arith.addf %69, %74 : vector<8x128xf32>
    %76 = vector.extract_strided_slice %0 {offsets = [3, 0, 0], sizes = [1, 8, 128], strides = [1, 1, 1]} : vector<4x8x128xf32> to vector<1x8x128xf32>
    %77 = vector.shape_cast %76 : vector<1x8x128xf32> to vector<8x128xf32>
    %c2_29 = arith.constant 2 : index
    %c3_30 = arith.constant 3 : index
    %78 = memref.load %arg2[%c2_29, %c3_30] : memref<6x4xf32, #tpu.memory_space<smem>>
    %79 = vector.broadcast %78 : f32 to vector<8x128xf32>
    %80 = arith.mulf %77, %79 : vector<8x128xf32>
    %81 = arith.addf %75, %80 : vector<8x128xf32>
    %c2_31 = arith.constant 2 : index
    %82 = memref.load %arg3[%c2_31] : memref<6xf32, #tpu.memory_space<smem>>
    %83 = vector.broadcast %82 : f32 to vector<8x128xf32>
    %84 = arith.addf %81, %83 : vector<8x128xf32>
    %c2_32 = arith.constant 2 : index
    %c0_33 = arith.constant 0 : index
    %c0_34 = arith.constant 0 : index
    %85 = vector.load %arg4[%c2_32, %c0_33, %c0_34] : memref<6x8x128xf32, #tpu.memory_space<vmem>>, vector<1x8x128xf32>
    %86 = vector.shape_cast %85 : vector<1x8x128xf32> to vector<8x128xf32>
    %87 = vector.shape_cast %84 : vector<8x128xf32> to vector<1x8x128xf32>
    tpu.vector_store %arg4[%c2_32, %c0_33, %c0_34], %87 {strides = array<i32>} : memref<6x8x128xf32, #tpu.memory_space<vmem>>, vector<1x8x128xf32>,
    %88 = vector.extract_strided_slice %0 {offsets = [0, 0, 0], sizes = [1, 8, 128], strides = [1, 1, 1]} : vector<4x8x128xf32> to vector<1x8x128xf32>
    %89 = vector.shape_cast %88 : vector<1x8x128xf32> to vector<8x128xf32>
    %c3_35 = arith.constant 3 : index
    %c0_36 = arith.constant 0 : index
    %90 = memref.load %arg2[%c3_35, %c0_36] : memref<6x4xf32, #tpu.memory_space<smem>>
    %91 = vector.broadcast %90 : f32 to vector<8x128xf32>
    %92 = arith.mulf %89, %91 : vector<8x128xf32>
    %93 = vector.extract_strided_slice %0 {offsets = [1, 0, 0], sizes = [1, 8, 128], strides = [1, 1, 1]} : vector<4x8x128xf32> to vector<1x8x128xf32>
    %94 = vector.shape_cast %93 : vector<1x8x128xf32> to vector<8x128xf32>
    %c3_37 = arith.constant 3 : index
    %c1_38 = arith.constant 1 : index
    %95 = memref.load %arg2[%c3_37, %c1_38] : memref<6x4xf32, #tpu.memory_space<smem>>
    %96 = vector.broadcast %95 : f32 to vector<8x128xf32>
    %97 = arith.mulf %94, %96 : vector<8x128xf32>
    %98 = arith.addf %92, %97 : vector<8x128xf32>
    %99 = vector.extract_strided_slice %0 {offsets = [2, 0, 0], sizes = [1, 8, 128], strides = [1, 1, 1]} : vector<4x8x128xf32> to vector<1x8x128xf32>
    %100 = vector.shape_cast %99 : vector<1x8x128xf32> to vector<8x128xf32>
    %c3_39 = arith.constant 3 : index
    %c2_40 = arith.constant 2 : index
    %101 = memref.load %arg2[%c3_39, %c2_40] : memref<6x4xf32, #tpu.memory_space<smem>>
    %102 = vector.broadcast %101 : f32 to vector<8x128xf32>
    %103 = arith.mulf %100, %102 : vector<8x128xf32>
    %104 = arith.addf %98, %103 : vector<8x128xf32>
    %105 = vector.extract_strided_slice %0 {offsets = [3, 0, 0], sizes = [1, 8, 128], strides = [1, 1, 1]} : vector<4x8x128xf32> to vector<1x8x128xf32>
    %106 = vector.shape_cast %105 : vector<1x8x128xf32> to vector<8x128xf32>
    %c3_41 = arith.constant 3 : index
    %c3_42 = arith.constant 3 : index
    %107 = memref.load %arg2[%c3_41, %c3_42] : memref<6x4xf32, #tpu.memory_space<smem>>
    %108 = vector.broadcast %107 : f32 to vector<8x128xf32>
    %109 = arith.mulf %106, %108 : vector<8x128xf32>
    %110 = arith.addf %104, %109 : vector<8x128xf32>
    %c3_43 = arith.constant 3 : index
    %111 = memref.load %arg3[%c3_43] : memref<6xf32, #tpu.memory_space<smem>>
    %112 = vector.broadcast %111 : f32 to vector<8x128xf32>
    %113 = arith.addf %110, %112 : vector<8x128xf32>
    %c3_44 = arith.constant 3 : index
    %c0_45 = arith.constant 0 : index
    %c0_46 = arith.constant 0 : index
    %114 = vector.load %arg4[%c3_44, %c0_45, %c0_46] : memref<6x8x128xf32, #tpu.memory_space<vmem>>, vector<1x8x128xf32>
    %115 = vector.shape_cast %114 : vector<1x8x128xf32> to vector<8x128xf32>
    %116 = vector.shape_cast %113 : vector<8x128xf32> to vector<1x8x128xf32>
    tpu.vector_store %arg4[%c3_44, %c0_45, %c0_46], %116 {strides = array<i32>} : memref<6x8x128xf32, #tpu.memory_space<vmem>>, vector<1x8x128xf32>,
    %117 = vector.extract_strided_slice %0 {offsets = [0, 0, 0], sizes = [1, 8, 128], strides = [1, 1, 1]} : vector<4x8x128xf32> to vector<1x8x128xf32>
    %118 = vector.shape_cast %117 : vector<1x8x128xf32> to vector<8x128xf32>
    %c4 = arith.constant 4 : index
    %c0_47 = arith.constant 0 : index
    %119 = memref.load %arg2[%c4, %c0_47] : memref<6x4xf32, #tpu.memory_space<smem>>
    %120 = vector.broadcast %119 : f32 to vector<8x128xf32>
    %121 = arith.mulf %118, %120 : vector<8x128xf32>
    %122 = vector.extract_strided_slice %0 {offsets = [1, 0, 0], sizes = [1, 8, 128], strides = [1, 1, 1]} : vector<4x8x128xf32> to vector<1x8x128xf32>
    %123 = vector.shape_cast %122 : vector<1x8x128xf32> to vector<8x128xf32>
    %c4_48 = arith.constant 4 : index
    %c1_49 = arith.constant 1 : index
    %124 = memref.load %arg2[%c4_48, %c1_49] : memref<6x4xf32, #tpu.memory_space<smem>>
    %125 = vector.broadcast %124 : f32 to vector<8x128xf32>
    %126 = arith.mulf %123, %125 : vector<8x128xf32>
    %127 = arith.addf %121, %126 : vector<8x128xf32>
    %128 = vector.extract_strided_slice %0 {offsets = [2, 0, 0], sizes = [1, 8, 128], strides = [1, 1, 1]} : vector<4x8x128xf32> to vector<1x8x128xf32>
    %129 = vector.shape_cast %128 : vector<1x8x128xf32> to vector<8x128xf32>
    %c4_50 = arith.constant 4 : index
    %c2_51 = arith.constant 2 : index
    %130 = memref.load %arg2[%c4_50, %c2_51] : memref<6x4xf32, #tpu.memory_space<smem>>
    %131 = vector.broadcast %130 : f32 to vector<8x128xf32>
    %132 = arith.mulf %129, %131 : vector<8x128xf32>
    %133 = arith.addf %127, %132 : vector<8x128xf32>
    %134 = vector.extract_strided_slice %0 {offsets = [3, 0, 0], sizes = [1, 8, 128], strides = [1, 1, 1]} : vector<4x8x128xf32> to vector<1x8x128xf32>
    %135 = vector.shape_cast %134 : vector<1x8x128xf32> to vector<8x128xf32>
    %c4_52 = arith.constant 4 : index
    %c3_53 = arith.constant 3 : index
    %136 = memref.load %arg2[%c4_52, %c3_53] : memref<6x4xf32, #tpu.memory_space<smem>>
    %137 = vector.broadcast %136 : f32 to vector<8x128xf32>
    %138 = arith.mulf %135, %137 : vector<8x128xf32>
    %139 = arith.addf %133, %138 : vector<8x128xf32>
    %c4_54 = arith.constant 4 : index
    %140 = memref.load %arg3[%c4_54] : memref<6xf32, #tpu.memory_space<smem>>
    %141 = vector.broadcast %140 : f32 to vector<8x128xf32>
    %142 = arith.addf %139, %141 : vector<8x128xf32>
    %c4_55 = arith.constant 4 : index
    %c0_56 = arith.constant 0 : index
    %c0_57 = arith.constant 0 : index
    %143 = vector.load %arg4[%c4_55, %c0_56, %c0_57] : memref<6x8x128xf32, #tpu.memory_space<vmem>>, vector<1x8x128xf32>
    %144 = vector.shape_cast %143 : vector<1x8x128xf32> to vector<8x128xf32>
    %145 = vector.shape_cast %142 : vector<8x128xf32> to vector<1x8x128xf32>
    tpu.vector_store %arg4[%c4_55, %c0_56, %c0_57], %145 {strides = array<i32>} : memref<6x8x128xf32, #tpu.memory_space<vmem>>, vector<1x8x128xf32>,
    %146 = vector.extract_strided_slice %0 {offsets = [0, 0, 0], sizes = [1, 8, 128], strides = [1, 1, 1]} : vector<4x8x128xf32> to vector<1x8x128xf32>
    %147 = vector.shape_cast %146 : vector<1x8x128xf32> to vector<8x128xf32>
    %c5 = arith.constant 5 : index
    %c0_58 = arith.constant 0 : index
    %148 = memref.load %arg2[%c5, %c0_58] : memref<6x4xf32, #tpu.memory_space<smem>>
    %149 = vector.broadcast %148 : f32 to vector<8x128xf32>
    %150 = arith.mulf %147, %149 : vector<8x128xf32>
    %151 = vector.extract_strided_slice %0 {offsets = [1, 0, 0], sizes = [1, 8, 128], strides = [1, 1, 1]} : vector<4x8x128xf32> to vector<1x8x128xf32>
    %152 = vector.shape_cast %151 : vector<1x8x128xf32> to vector<8x128xf32>
    %c5_59 = arith.constant 5 : index
    %c1_60 = arith.constant 1 : index
    %153 = memref.load %arg2[%c5_59, %c1_60] : memref<6x4xf32, #tpu.memory_space<smem>>
    %154 = vector.broadcast %153 : f32 to vector<8x128xf32>
    %155 = arith.mulf %152, %154 : vector<8x128xf32>
    %156 = arith.addf %150, %155 : vector<8x128xf32>
    %157 = vector.extract_strided_slice %0 {offsets = [2, 0, 0], sizes = [1, 8, 128], strides = [1, 1, 1]} : vector<4x8x128xf32> to vector<1x8x128xf32>
    %158 = vector.shape_cast %157 : vector<1x8x128xf32> to vector<8x128xf32>
    %c5_61 = arith.constant 5 : index
    %c2_62 = arith.constant 2 : index
    %159 = memref.load %arg2[%c5_61, %c2_62] : memref<6x4xf32, #tpu.memory_space<smem>>
    %160 = vector.broadcast %159 : f32 to vector<8x128xf32>
    %161 = arith.mulf %158, %160 : vector<8x128xf32>
    %162 = arith.addf %156, %161 : vector<8x128xf32>
    %163 = vector.extract_strided_slice %0 {offsets = [3, 0, 0], sizes = [1, 8, 128], strides = [1, 1, 1]} : vector<4x8x128xf32> to vector<1x8x128xf32>
    %164 = vector.shape_cast %163 : vector<1x8x128xf32> to vector<8x128xf32>
    %c5_63 = arith.constant 5 : index
    %c3_64 = arith.constant 3 : index
    %165 = memref.load %arg2[%c5_63, %c3_64] : memref<6x4xf32, #tpu.memory_space<smem>>
    %166 = vector.broadcast %165 : f32 to vector<8x128xf32>
    %167 = arith.mulf %164, %166 : vector<8x128xf32>
    %168 = arith.addf %162, %167 : vector<8x128xf32>
    %c5_65 = arith.constant 5 : index
    %169 = memref.load %arg3[%c5_65] : memref<6xf32, #tpu.memory_space<smem>>
    %170 = vector.broadcast %169 : f32 to vector<8x128xf32>
    %171 = arith.addf %168, %170 : vector<8x128xf32>
    %c5_66 = arith.constant 5 : index
    %c0_67 = arith.constant 0 : index
    %c0_68 = arith.constant 0 : index
    %172 = vector.load %arg4[%c5_66, %c0_67, %c0_68] : memref<6x8x128xf32, #tpu.memory_space<vmem>>, vector<1x8x128xf32>
    %173 = vector.shape_cast %172 : vector<1x8x128xf32> to vector<8x128xf32>
    %174 = vector.shape_cast %171 : vector<8x128xf32> to vector<1x8x128xf32>
    tpu.vector_store %arg4[%c5_66, %c0_67, %c0_68], %174 {strides = array<i32>} : memref<6x8x128xf32, #tpu.memory_space<vmem>>, vector<1x8x128xf32>,
    return
  }
  func.func @transform_0(%arg0: i32) -> (i32, i32, i32) {
    %c0_i32 = arith.constant 0 : i32
    %c0_i32_0 = arith.constant 0 : i32
    %c0_i32_1 = arith.constant 0 : i32
    return %c0_i32, %arg0, %c0_i32_0 : i32, i32, i32
  }
  func.func @transform_1(%arg0: i32) -> (i32, i32) {
    %c0_i32 = arith.constant 0 : i32
    %c0_i32_0 = arith.constant 0 : i32
    %c0_i32_1 = arith.constant 0 : i32
    return %c0_i32, %c0_i32_0 : i32, i32
  }
  func.func @transform_2(%arg0: i32) -> i32 {
    %c0_i32 = arith.constant 0 : i32
    %c0_i32_0 = arith.constant 0 : i32
    return %c0_i32 : i32
  }
  func.func @transform_3(%arg0: i32) -> (i32, i32, i32) {
    %c0_i32 = arith.constant 0 : i32
    %c0_i32_0 = arith.constant 0 : i32
    %c0_i32_1 = arith.constant 0 : i32
    return %c0_i32, %arg0, %c0_i32_0 : i32, i32, i32
  }
}

</mosaic_0001>

<llo_original>
// kernel: tpu_custom_call.1
$region0: #{tpu_custom_call.1}
  #allocation0 [shape = 'u32[]', space=smem, size = 0x4, offset = 0x4, fixed_abs, tag = 'smem constant byte address 0x4 - core index']
  #allocation1 [shape = 'u32[144,128]{1,0:T(1,128)}', space=vmem, size = 0x12000, scoped, tag = 'internal scratch']
  %s0 = inlined_call_operand.hbm [shape: f32[4,16,128], index: 0, kind: input, shape index: {}]
  %s1 = inlined_call_operand.vmem [shape: f32[6,4], index: 1, kind: input, shape index: {}]
  %s2 = inlined_call_operand.vmem [shape: f32[6], index: 2, kind: input, shape index: {}]
  %s3 = inlined_call_operand.hbm [shape: f32[6,16,128], index: 3, kind: output, shape index: {}]
  %s4 = sld [smem:[#allocation0]]
  $region57: #{tpu_custom_call.1} parent=0
    _
  %s6 = ssub.s32 1, %s4
  %s7 = scalar_select 0, %s6, %s4
  $region1: #{tpu_custom_call.1} parent=0
    #allocation2 [shape = 'u8[32768]{0}', space=vmem, size = 0x8000, scoped, tag = 'input window, operand 0']
    #allocation3 [shape = 's32[2]{0}', space=sflag, size = 0x8, scoped, tag = 'scoped memory for tpu_custom_call.1']
    #allocation4 [shape = 's32[2]{0}', space=sflag, size = 0x8, scoped, tag = 'scoped memory for tpu_custom_call.1']
    #allocation5 [shape = 's32[2]{0}', space=sflag, size = 0x8, scoped, tag = 'scoped memory for tpu_custom_call.1']
    #allocation6 [shape = 'u8[4096]{0}', space=smem, size = 0x1000, scoped, tag = 'input window, operand 1, single buffered']
    #allocation7 [shape = 'u8[512]{0}', space=smem, size = 0x200, scoped, tag = 'input window, operand 2, single buffered']
    #allocation8 [shape = 's32[1]{0}', space=sflag, size = 0x4, scoped, tag = 'scoped memory for tpu_custom_call.1']
    #allocation9 [shape = 'u8[49152]{0}', space=vmem, size = 0xc000, scoped, tag = 'output window, operand 0']
    %8 = vsyncpa [#allocation3], 0
    %s9 = scalar_lea.sflag [#allocation3], 1
    %10 = vsyncpa %s9, 0
    %11 = vsyncpa [#allocation5], 0
    %12 = vsyncpa [#allocation8], 0
    %13 = vsyncpa [#allocation4], 0
    %s14 = scalar_lea.sflag [#allocation4], 1
    %15 = vsyncpa %s14, 0
    loop: start=0, step=1, limit=4
    $region2: #{tpu_custom_call.1} parent=1 // loop_pre_header
      _
    $region3: #{tpu_custom_call.1} parent=1 // loop_header
      %s17 = sphi 0, %s21
      %p18 = scmp.ge.s32.totalorder %s17, 4
      %s27 = sphi 0, %s29
      %s30 = sphi 0, %s27
      %s31 = sphi 0, %s30
      %s47 = sphi 0, %s31
      %s51 = sphi 0, %s51
      %s53 = sphi 0, %s51
      %s54 = sphi 0, %s53
      %s68 = sphi 0, %s54
      %s72 = sphi 0, %s72
      %s74 = sphi 0, %s72
      %s75 = sphi 0, %s74
      %s89 = sphi 0, %s75
      %s95 = sphi 0, %s97
      %s98 = sphi 0, %s95
      %s99 = sphi 0, %s98
      %s115 = sphi 0, %s99
    $region4: #{tpu_custom_call.1} parent=1 // loop_header_branch
      %20 = sbr.rel (%p18) target = $region8
    $region5: #{tpu_custom_call.1} parent=1 // loop_body
      %s22 = ssub.s32 %s17, 1
      %s23 = ssub.s32 %s17, 2
      %s24 = sadd.s32 %s17, 1
      %s25 = ssub.s32 %s17, %s24
      %p26 = scmp.eq.s32.totalorder %s25, 0
      %s28 = sadd.s32 %s27, 1
      %s29 = scalar_select %p26, %s27, %s28
      %p32 = pneg %p26
      %p33 = scmp.eq.s32.totalorder %s17, 1
      %p34 = por %p32, %p33
      %p35 = scmp.ne.s32.totalorder %s27, %s30
      %p36 = scmp.eq.s32.totalorder %s17, 0
      %p37 = por %p35, %p36
      %p38 = scmp.ne.s32.totalorder %s27, %s30
      %p39 = scmp.eq.s32.totalorder %s22, 1
      %p40 = por %p38, %p39
      %p41 = scmp.ne.s32.totalorder %s30, %s31
      %p42 = scmp.eq.s32.totalorder %s22, 0
      %p43 = por %p41, %p42
      %p44 = scmp.ne.s32.totalorder %s30, %s31
      %p45 = scmp.eq.s32.totalorder %s23, 1
      %p46 = por %p44, %p45
      %p48 = scmp.ne.s32.totalorder %s31, %s47
      %p49 = scmp.eq.s32.totalorder %s23, 0
      %p50 = por %p48, %p49
      %s52 = sadd.s32 %s51, 1
      %p55 = scmp.eq.s32.totalorder %s17, 1
      %p56 = scmp.ne.s32.totalorder %s51, %s53
      %p57 = scmp.eq.s32.totalorder %s17, 0
      %p58 = por %p56, %p57
      %p59 = scmp.ne.s32.totalorder %s51, %s53
      %p60 = scmp.eq.s32.totalorder %s22, 1
      %p61 = por %p59, %p60
      %p62 = scmp.ne.s32.totalorder %s53, %s54
      %p63 = scmp.eq.s32.totalorder %s22, 0
      %p64 = por %p62, %p63
      %p65 = scmp.ne.s32.totalorder %s53, %s54
      %p66 = scmp.eq.s32.totalorder %s23, 1
      %p67 = por %p65, %p66
      %p69 = scmp.ne.s32.totalorder %s54, %s68
      %p70 = scmp.eq.s32.totalorder %s23, 0
      %p71 = por %p69, %p70
      %s73 = sadd.s32 %s72, 1
      %p76 = scmp.eq.s32.totalorder %s17, 1
      %p77 = scmp.ne.s32.totalorder %s72, %s74
      %p78 = scmp.eq.s32.totalorder %s17, 0
      %p79 = por %p77, %p78
      %p80 = scmp.ne.s32.totalorder %s72, %s74
      %p81 = scmp.eq.s32.totalorder %s22, 1
      %p82 = por %p80, %p81
      %p83 = scmp.ne.s32.totalorder %s74, %s75
      %p84 = scmp.eq.s32.totalorder %s22, 0
      %p85 = por %p83, %p84
      %p86 = scmp.ne.s32.totalorder %s74, %s75
      %p87 = scmp.eq.s32.totalorder %s23, 1
      %p88 = por %p86, %p87
      %p90 = scmp.ne.s32.totalorder %s75, %s89
      %p91 = scmp.eq.s32.totalorder %s23, 0
      %p92 = por %p90, %p91
      %s93 = ssub.s32 %s17, %s24
      %p94 = scmp.eq.s32.totalorder %s93, 0
      %s96 = sadd.s32 %s95, 1
      %s97 = scalar_select %p94, %s95, %s96
      %p100 = pneg %p94
      %p101 = scmp.eq.s32.totalorder %s17, 1
      %p102 = por %p100, %p101
      %p103 = scmp.ne.s32.totalorder %s95, %s98
      %p104 = scmp.eq.s32.totalorder %s17, 0
      %p105 = por %p103, %p104
      %p106 = scmp.ne.s32.totalorder %s95, %s98
      %p107 = scmp.eq.s32.totalorder %s22, 1
      %p108 = por %p106, %p107
      %p109 = scmp.ne.s32.totalorder %s98, %s99
      %p110 = scmp.eq.s32.totalorder %s22, 0
      %p111 = por %p109, %p110
      %p112 = scmp.ne.s32.totalorder %s98, %s99
      %p113 = scmp.eq.s32.totalorder %s23, 1
      %p114 = por %p112, %p113
      %p116 = scmp.ne.s32.totalorder %s99, %s115
      %p117 = scmp.eq.s32.totalorder %s23, 0
      %p118 = por %p116, %p117
      %p119 = scmp.le.s32.totalorder 1, %s17
      %p120 = scmp.lt.s32.totalorder %s17, 3
      %p121 = pnand %p119, %p120
      %p122 = pneg %p121
      // Predicated region
      $region9: #{tpu_custom_call.1} parent=5 // pred_check
        _
      $region10: #{tpu_custom_call.1} parent=5 // pred_check_branch
        %124 = sbr.rel (%p121) target = $region12
      $region11: #{tpu_custom_call.1} parent=5 // pred_region
        %s125 = ssub.s32 %s17, 1
        // Predicated region
        $region13: #{tpu_custom_call.1} parent=11 // pred_check
          %p126 = pneg %p64
        $region14: #{tpu_custom_call.1} parent=11 // pred_check_branch
          %128 = sbr.rel (%p126) target = $region16
        $region15: #{tpu_custom_call.1} parent=11 // pred_region
          %s130 = ssub.s32 128, 128
          %131 = vsyncadd [#allocation5], %s130
          %s133 = sshll.u32 %s1, 4
          %s134 = int_to_ptr.vmem [resolvable:$true] %s133
          %136 = dma.vmem_to_smem %s134, 128, [#allocation6], [#allocation5]
        $region16: #{tpu_custom_call.1} parent=11 // pred_fallthru
          _
        // Predicated region
        $region17: #{tpu_custom_call.1} parent=11 // pred_check
          %p137 = pneg %p85
        $region18: #{tpu_custom_call.1} parent=11 // pred_check_branch
          %139 = sbr.rel (%p137) target = $region20
        $region19: #{tpu_custom_call.1} parent=11 // pred_region
          %s141 = ssub.s32 16, 16
          %142 = vsyncadd [#allocation8], %s141
          %s144 = sshll.u32 %s2, 4
          %s145 = int_to_ptr.vmem [resolvable:$true] %s144
          %147 = dma.vmem_to_smem %s145, 16, [#allocation7], [#allocation8]
        $region20: #{tpu_custom_call.1} parent=11 // pred_fallthru
          _
      $region12: #{tpu_custom_call.1} parent=5 // pred_fallthru
        _
      %p148 = scmp.lt.s32.totalorder %s17, 2
      // Predicated region
      $region21: #{tpu_custom_call.1} parent=5 // pred_check
        %p149 = pneg %p148
      $region22: #{tpu_custom_call.1} parent=5 // pred_check_branch
        %151 = sbr.rel (%p149) target = $region24
      $region23: #{tpu_custom_call.1} parent=5 // pred_region
        // Predicated region
        $region25: #{tpu_custom_call.1} parent=23 // pred_check
          %p152 = pneg %p37
        $region26: #{tpu_custom_call.1} parent=23 // pred_check_branch
          %154 = sbr.rel (%p152) target = $region28
        $region27: #{tpu_custom_call.1} parent=23 // pred_region
          %s155 = sand.u32 %s27, 1
          %s156 = scalar_lea.sflag [#allocation3], %s155
          %s157 = sand.u32 %s27, 1
          %s158 = smul.addr %s157, 32
          %s159 = scalar_lea.vmem [#allocation2], %s158
          %s161 = ssub.s32 512, 512
          %162 = vsyncadd %s156, %s161
          %s163 = smul.addr %s17, 128
          %s164 = scalar_lea.hbm %s0, %s163
          %s165 = sshll.u32 %s159, 4
          %s166 = int_to_ptr.vmem [resolvable:$true] %s165
          %171 = dma.hbm_to_vmem [thread:$0]  %s164, 512, %s166, %s156, 256, 128, 8
        $region28: #{tpu_custom_call.1} parent=23 // pred_fallthru
          _
      $region24: #{tpu_custom_call.1} parent=5 // pred_fallthru
        _
      %p172 = scmp.le.s32.totalorder 1, %s17
      %p173 = scmp.lt.s32.totalorder %s17, 3
      %p174 = pnand %p172, %p173
      %p175 = pneg %p174
      // Predicated region
      $region29: #{tpu_custom_call.1} parent=5 // pred_check
        _
      $region30: #{tpu_custom_call.1} parent=5 // pred_check_branch
        %177 = sbr.rel (%p174) target = $region32
      $region31: #{tpu_custom_call.1} parent=5 // pred_region
        %s178 = ssub.s32 %s17, 1
        %s179 = sand.u32 %s30, 1
        %s180 = scalar_lea.sflag [#allocation3], %s179
        %s181 = sand.u32 %s30, 1
        %s182 = smul.addr %s181, 32
        %s183 = scalar_lea.vmem [#allocation2], %s182
        // Predicated region
        $region33: #{tpu_custom_call.1} parent=31 // pred_check
          %p184 = pneg %p43
        $region34: #{tpu_custom_call.1} parent=31 // pred_check_branch
          %186 = sbr.rel (%p184) target = $region36
        $region35: #{tpu_custom_call.1} parent=31 // pred_region
          %187 = dma.done %s180, 512
        $region36: #{tpu_custom_call.1} parent=31 // pred_fallthru
          _
        // Predicated region
        $region37: #{tpu_custom_call.1} parent=31 // pred_check
          %p188 = pneg %p64
        $region38: #{tpu_custom_call.1} parent=31 // pred_check_branch
          %190 = sbr.rel (%p188) target = $region40
        $region39: #{tpu_custom_call.1} parent=31 // pred_region
          %191 = dma.done [#allocation5], 128
        $region40: #{tpu_custom_call.1} parent=31 // pred_fallthru
          _
        // Predicated region
        $region41: #{tpu_custom_call.1} parent=31 // pred_check
          %p192 = pneg %p85
        $region42: #{tpu_custom_call.1} parent=31 // pred_check_branch
          %194 = sbr.rel (%p192) target = $region44
        $region43: #{tpu_custom_call.1} parent=31 // pred_region
          %195 = dma.done [#allocation8], 16
        $region44: #{tpu_custom_call.1} parent=31 // pred_fallthru
          _
        %196 = sfence
        %s197 = sand.u32 %s30, 1
        %s198 = scalar_lea.sflag [#allocation3], %s197
        %s199 = sand.u32 %s30, 1
        %s200 = smul.addr %s199, 32
        %s201 = scalar_lea.vmem [#allocation2], %s200
        %p202 = pneg %p43
        %p203 = pneg %p40
        %p204 = pneg %p64
        %p205 = pneg %p61
        %p206 = pneg %p85
        %p207 = pneg %p82
        %p208 = pneg %p111
        %p209 = pneg %p108
        %s210 = sand.u32 %s98, 1
        %s211 = scalar_lea.sflag [#allocation4], %s210
        %s212 = sand.u32 %s98, 1
        %s213 = smul.addr %s212, 48
        %s214 = scalar_lea.vmem [#allocation9], %s213
        %v215 = vld [vmem:[%s183] sm:$0xff]
        %v216 = vld [vmem:[%s183 + $0x8] sm:$0xff]
        %v217 = vld [vmem:[%s183 + $0x10] sm:$0xff]
        %v218 = vld [vmem:[%s183 + $0x18] sm:$0xff]
        %s219 = sld [smem:[#allocation6]]
        %v220 = vstv %s219
        %v221 = vmul.f32 %v215, %v220
        %s222 = sld [smem:[#allocation6 + $0x1]]
        %v223 = vstv %s222
        %v224 = vmul.f32 %v216, %v223
        %v225 = vadd.f32 %v221, %v224
        %s226 = sld [smem:[#allocation6 + $0x2]]
        %v227 = vstv %s226
        %v228 = vmul.f32 %v217, %v227
        %v229 = vadd.f32 %v225, %v228
        %s230 = sld [smem:[#allocation6 + $0x3]]
        %v231 = vstv %s230
        %v232 = vmul.f32 %v218, %v231
        %v233 = vadd.f32 %v229, %v232
        %s234 = sld [smem:[#allocation7]]
        %v235 = vstv %s234
        %v236 = vadd.f32 %v233, %v235
        %237 = vst [vmem:[%s214] sm:$0xff] %v236
        %s238 = sld [smem:[#allocation6 + $0x80]]
        %v239 = vstv %s238
        %v240 = vmul.f32 %v215, %v239
        %s241 = sld [smem:[#allocation6 + $0x81]]
        %v242 = vstv %s241
        %v243 = vmul.f32 %v216, %v242
        %v244 = vadd.f32 %v240, %v243
        %s245 = sld [smem:[#allocation6 + $0x82]]
        %v246 = vstv %s245
        %v247 = vmul.f32 %v217, %v246
        %v248 = vadd.f32 %v244, %v247
        %s249 = sld [smem:[#allocation6 + $0x83]]
        %v250 = vstv %s249
        %v251 = vmul.f32 %v218, %v250
        %v252 = vadd.f32 %v248, %v251
        %s253 = sld [smem:[#allocation7 + $0x1]]
        %v254 = vstv %s253
        %v255 = vadd.f32 %v252, %v254
        %s256 = scalar_lea.vmem %s214, 8 [#allocation9]
        %257 = vst [vmem:[%s256] sm:$0xff] %v255
        %s258 = sld [smem:[#allocation6 + $0x100]]
        %v259 = vstv %s258
        %v260 = vmul.f32 %v215, %v259
        %s261 = sld [smem:[#allocation6 + $0x101]]
        %v262 = vstv %s261
        %v263 = vmul.f32 %v216, %v262
        %v264 = vadd.f32 %v260, %v263
        %s265 = sld [smem:[#allocation6 + $0x102]]
        %v266 = vstv %s265
        %v267 = vmul.f32 %v217, %v266
        %v268 = vadd.f32 %v264, %v267
        %s269 = sld [smem:[#allocation6 + $0x103]]
        %v270 = vstv %s269
        %v271 = vmul.f32 %v218, %v270
        %v272 = vadd.f32 %v268, %v271
        %s273 = sld [smem:[#allocation7 + $0x2]]
        %v274 = vstv %s273
        %v275 = vadd.f32 %v272, %v274
        %s276 = scalar_lea.vmem %s214, 16 [#allocation9]
        %277 = vst [vmem:[%s276] sm:$0xff] %v275
        %s278 = sld [smem:[#allocation6 + $0x180]]
        %v279 = vstv %s278
        %v280 = vmul.f32 %v215, %v279
        %s281 = sld [smem:[#allocation6 + $0x181]]
        %v282 = vstv %s281
        %v283 = vmul.f32 %v216, %v282
        %v284 = vadd.f32 %v280, %v283
        %s285 = sld [smem:[#allocation6 + $0x182]]
        %v286 = vstv %s285
        %v287 = vmul.f32 %v217, %v286
        %v288 = vadd.f32 %v284, %v287
        %s289 = sld [smem:[#allocation6 + $0x183]]
        %v290 = vstv %s289
        %v291 = vmul.f32 %v218, %v290
        %v292 = vadd.f32 %v288, %v291
        %s293 = sld [smem:[#allocation7 + $0x3]]
        %v294 = vstv %s293
        %v295 = vadd.f32 %v292, %v294
        %s296 = scalar_lea.vmem %s214, 24 [#allocation9]
        %297 = vst [vmem:[%s296] sm:$0xff] %v295
        %s298 = sld [smem:[#allocation6 + $0x200]]
        %v299 = vstv %s298
        %v300 = vmul.f32 %v215, %v299
        %s301 = sld [smem:[#allocation6 + $0x201]]
        %v302 = vstv %s301
        %v303 = vmul.f32 %v216, %v302
        %v304 = vadd.f32 %v300, %v303
        %s305 = sld [smem:[#allocation6 + $0x202]]
        %v306 = vstv %s305
        %v307 = vmul.f32 %v217, %v306
        %v308 = vadd.f32 %v304, %v307
        %s309 = sld [smem:[#allocation6 + $0x203]]
        %v310 = vstv %s309
        %v311 = vmul.f32 %v218, %v310
        %v312 = vadd.f32 %v308, %v311
        %s313 = sld [smem:[#allocation7 + $0x4]]
        %v314 = vstv %s313
        %v315 = vadd.f32 %v312, %v314
        %s316 = scalar_lea.vmem %s214, 32 [#allocation9]
        %317 = vst [vmem:[%s316] sm:$0xff] %v315
        %s318 = sld [smem:[#allocation6 + $0x280]]
        %v319 = vstv %s318
        %v320 = vmul.f32 %v215, %v319
        %s321 = sld [smem:[#allocation6 + $0x281]]
        %v322 = vstv %s321
        %v323 = vmul.f32 %v216, %v322
        %v324 = vadd.f32 %v320, %v323
        %s325 = sld [smem:[#allocation6 + $0x282]]
        %v326 = vstv %s325
        %v327 = vmul.f32 %v217, %v326
        %v328 = vadd.f32 %v324, %v327
        %s329 = sld [smem:[#allocation6 + $0x283]]
        %v330 = vstv %s329
        %v331 = vmul.f32 %v218, %v330
        %v332 = vadd.f32 %v328, %v331
        %s333 = sld [smem:[#allocation7 + $0x5]]
        %v334 = vstv %s333
        %v335 = vadd.f32 %v332, %v334
        %s336 = scalar_lea.vmem %s214, 40 [#allocation9]
        %337 = vst [vmem:[%s336] sm:$0xff] %v335
        %s338 = sand.u32 %s98, 1
        %s339 = scalar_lea.sflag [#allocation4], %s338
        %s340 = sand.u32 %s98, 1
        %s341 = smul.addr %s340, 48
        %s342 = scalar_lea.vmem [#allocation9], %s341
        // Predicated region
        $region45: #{tpu_custom_call.1} parent=31 // pred_check
          %p343 = pneg %p108
        $region46: #{tpu_custom_call.1} parent=31 // pred_check_branch
          %345 = sbr.rel (%p343) target = $region48
        $region47: #{tpu_custom_call.1} parent=31 // pred_region
          %s347 = ssub.s32 768, 768
          %348 = vsyncadd %s339, %s347
          %s349 = smul.addr %s22, 128
          %s350 = scalar_lea.hbm %s3, %s349
          %s351 = sshll.u32 %s342, 4
          %s352 = int_to_ptr.vmem [resolvable:$true] %s351
          %357 = dma.vmem_to_hbm [thread:$0]  %s352, 768, %s350, %s339, 128, 256, 8
        $region48: #{tpu_custom_call.1} parent=31 // pred_fallthru
          _
      $region32: #{tpu_custom_call.1} parent=5 // pred_fallthru
        _
      %p358 = scmp.le.s32.totalorder 2, %s17
      // Predicated region
      $region49: #{tpu_custom_call.1} parent=5 // pred_check
        %p359 = pneg %p358
      $region50: #{tpu_custom_call.1} parent=5 // pred_check_branch
        %361 = sbr.rel (%p359) target = $region52
      $region51: #{tpu_custom_call.1} parent=5 // pred_region
        %s362 = ssub.s32 %s17, 2
        // Predicated region
        $region53: #{tpu_custom_call.1} parent=51 // pred_check
          %p363 = pneg %p114
        $region54: #{tpu_custom_call.1} parent=51 // pred_check_branch
          %365 = sbr.rel (%p363) target = $region56
        $region55: #{tpu_custom_call.1} parent=51 // pred_region
          %s366 = sand.u32 %s99, 1
          %s367 = scalar_lea.sflag [#allocation4], %s366
          %s368 = sand.u32 %s99, 1
          %s369 = smul.addr %s368, 48
          %s370 = scalar_lea.vmem [#allocation9], %s369
          %371 = dma.done %s367, 768
        $region56: #{tpu_custom_call.1} parent=51 // pred_fallthru
          _
      $region52: #{tpu_custom_call.1} parent=5 // pred_fallthru
        _
    $region6: #{tpu_custom_call.1} parent=1 // loop_footer
      %s21 = sadd.s32 1, %s17
    $region7: #{tpu_custom_call.1} parent=1 // loop_footer_branch
      %16 = sbr.rel target = $region3
    $region8: #{tpu_custom_call.1} parent=1 // loop_exit
      _
    %372 = vsyncpa [#allocation3], 1
    %s373 = scalar_lea.sflag [#allocation3], 1
    %374 = vsyncpa %s373, 1
    %375 = vsyncpa [#allocation4], 1
    %s376 = scalar_lea.sflag [#allocation4], 1
    %377 = vsyncpa %s376, 1
    %378 = vsyncpa [#allocation5], 1
    %s379 = scalar_lea.sflag [#allocation5], 1
    %380 = vsyncpa %s379, 1
    %381 = vsyncpa [#allocation8], 1

</llo_original>
